<compile_context>
chip_gen: v7x
topology: tpu7x:2x2x1
jax: 0.10.0
libtpu: 0.0.40
codegen_flags: <defaults>
</compile_context>

<pallas_src>
import math

import jax
import jax.numpy as jnp
from jax import lax
from jax.experimental import pallas as pl
from jax.experimental.pallas import tpu as pltpu


def _round_up(x, m):
    return ((x + m - 1) // m) * m


def _cdiv(a, b):
    return (a + b - 1) // b


def _vmem_budget_bytes():
    """Usable VMEM budget: physical capacity minus headroom for compiler scratch."""
    try:
        cap = int(pltpu.get_tpu_info().vmem_capacity_bytes)
    except Exception:
        cap = 64 * 1024 * 1024  # conservative (v7x-sized) fallback
    headroom = 12 * 1024 * 1024
    return max(min(cap - headroom, (cap * 7) // 8), 32 * 1024 * 1024)


def _make_ff_kernel(use_bf16_mxu, has_scratch):
    inv_sqrt2 = 1.0 / math.sqrt(2.0)

    def kernel(x_ref, w1_ref, b1_ref, w2_ref, b2_ref, o_ref, *scratch):
        # x_ref: (tm, dim)   w1_ref: (dim, th)   b1_ref: (1, th)
        # w2_ref: (th, dim)  b2_ref: (1, dim)    o_ref: (tm, dim)
        acc_ref = scratch[0] if has_scratch else o_ref   # f32 accumulator
        j = pl.program_id(1)

        @pl.when(j == 0)
        def _():
            # Initialize the resident accumulator with the output bias (saves a
            # separate full (tm, dim) add at finalize time).
            acc_ref[...] = jnp.broadcast_to(
                b2_ref[...].astype(acc_ref.dtype), acc_ref.shape)

        x = x_ref[...]
        w1 = w1_ref[...]
        if use_bf16_mxu:
            x = x.astype(jnp.bfloat16)
            w1 = w1.astype(jnp.bfloat16)
        # Linear 1 on this hidden slab (f32 accumulation on the MXU).
        h = jnp.dot(x, w1, preferred_element_type=jnp.float32)
        h = h + b1_ref[...].astype(jnp.float32)

        # Exact GELU (matches torch.nn.GELU() default): 0.5*x*(1+erf(x/sqrt(2))).
        h = 0.5 * h * (1.0 + lax.erf(h * inv_sqrt2))

        w2 = w2_ref[...]
        if use_bf16_mxu:
            h = h.astype(jnp.bfloat16)
            w2 = w2.astype(jnp.bfloat16)
        else:
            h = h.astype(w2_ref.dtype)
        # Linear 2 partial product for this hidden slab, accumulated in f32.
        acc_ref[...] += jnp.dot(
            h, w2, preferred_element_type=jnp.float32).astype(acc_ref.dtype)

        if has_scratch:
            @pl.when(j == pl.num_programs(1) - 1)
            def _():
                o_ref[...] = acc_ref[...].astype(o_ref.dtype)

    return kernel


def feed_forward(x, w1, b1, w2, b2, *, tm=None, th=None, use_bf16_mxu=False):
    """x: (M, dim). w1: (dim, hidden), b1: (hidden,), w2: (hidden, dim), b2: (dim,)."""
    M, dim = x.shape
    hidden = w1.shape[1]
    out_dtype = x.dtype

    xb = jnp.dtype(x.dtype).itemsize
    wb = jnp.dtype(w1.dtype).itemsize
    ob = jnp.dtype(out_dtype).itemsize
    sublane = {4: 8, 2: 16, 1: 32}.get(xb, 8)   # dtype-native sublane packing

    vmem_budget = _vmem_budget_bytes()
    acc_in_out = jnp.dtype(out_dtype) == jnp.dtype(jnp.float32)

    # ---------------- row tile ----------------
    if tm is None:
        tm = min(512, _round_up(M, sublane))
        # Megacore (v7x has 2 TCs/chip): keep >= 2 row tiles when M allows.
        if M > sublane and _cdiv(M, tm) < 2:
            tm = _round_up(_cdiv(M, 2), sublane)
    else:
        tm = max(sublane, _round_up(min(int(tm), max(M, 1)), sublane))

    # ---------------- hidden tile ----------------
    bias_bytes = 2 * (hidden + dim) * wb          # double-buffered bias blocks
    if th is None:
        while True:
            row_bytes = 2 * tm * dim * (xb + ob)  # double-buffered x + out blocks
            resident_bytes = row_bytes + 4 * dim * hidden * wb + bias_bytes
            if resident_bytes <= vmem_budget:
                th = hidden                        # weights fully resident
                break
            acc_bytes = 0 if acc_in_out else tm * dim * 4
            avail = vmem_budget - row_bytes - acc_bytes - 2 * dim * wb
            per_th = (4 * dim + 2) * wb            # W1 col + W2 row + b1, x2 buffers
            th_cand = (avail // per_th) // 128 * 128 if avail > 0 else 0
            if th_cand >= 128:
                th = int(min(th_cand, _round_up(hidden, 128)))
                break
            if tm <= sublane:
                th = hidden if hidden <= 128 else 128   # last resort
                break
            tm = max(sublane, _round_up(tm // 2, sublane))
    else:
        th = int(th)
        if th < hidden:
            th = max(128, (th // 128) * 128)
        if th >= hidden:
            th = hidden

    num_row_tiles = _cdiv(M, tm)

    # Zero-pad the hidden axis of the weights (mathematically exact) so th tiles
    # it evenly.  x / output are never padded (ragged row tiles handled by grid).
    if th < hidden:
        hidden_p = _round_up(hidden, th)
        if hidden_p != hidden:
            pad = hidden_p - hidden
            w1 = jnp.pad(w1, ((0, 0), (0, pad)))
            b1 = jnp.pad(b1, ((0, pad),))
            w2 = jnp.pad(w2, ((0, pad), (0, 0)))
    else:
        hidden_p = hidden
    num_h = hidden_p // th

    b1_2d = b1.reshape(1, hidden_p)
    b2_2d = b2.reshape(1, dim)

    has_scratch = not acc_in_out
    kernel = _make_ff_kernel(use_bf16_mxu, has_scratch)
    scratch_shapes = [pltpu.VMEM((tm, dim), jnp.float32)] if has_scratch else []

    # Weight blocks are fetched once when resident (constant block index) and
    # once per row tile when the hidden axis is tiled.
    weight_bytes = (w1.size + w2.size + b1_2d.size + b2_2d.size) * wb
    weight_passes = 1 if num_h == 1 else num_row_tiles
    cost = pl.CostEstimate(
        flops=4 * M * dim * hidden,
        transcendentals=M * hidden,
        bytes_accessed=int(x.size * xb + M * dim * ob + weight_passes * weight_bytes),
    )

    grid = (num_row_tiles, num_h)
    out = pl.pallas_call(
        kernel,
        out_shape=jax.ShapeDtypeStruct((M, dim), out_dtype),
        grid_spec=pltpu.PrefetchScalarGridSpec(
            num_scalar_prefetch=0,
            grid=grid,
            in_specs=[
                pl.BlockSpec((tm, dim), lambda i, j: (i, 0)),   # x row tile
                pl.BlockSpec((dim, th), lambda i, j: (0, j)),   # W1 hidden slab
                pl.BlockSpec((1, th),   lambda i, j: (0, j)),   # b1 slab
                pl.BlockSpec((th, dim), lambda i, j: (j, 0)),   # W2 hidden slab
                pl.BlockSpec((1, dim),  lambda i, j: (0, 0)),   # b2
            ],
            out_specs=pl.BlockSpec((tm, dim), lambda i, j: (i, 0)),
            scratch_shapes=scratch_shapes,
        ),
        compiler_params=pltpu.CompilerParams(
            dimension_semantics=("parallel", "arbitrary"),
            vmem_limit_bytes=int(vmem_budget),
        ),
        cost_estimate=cost,
    )(x, w1, b1_2d, w2, b2_2d)

    return out


def _ref_ff(x2d, w1, b1, w2, b2):
    xf = x2d.astype(jnp.float32)
    h = xf @ w1.astype(jnp.float32) + b1.astype(jnp.float32)
    h = 0.5 * h * (1.0 + lax.erf(h / math.sqrt(2.0)))
    return h @ w2.astype(jnp.float32) + b2.astype(jnp.float32)


def _torch_linear_init(key, fan_in, shape_w, shape_b):
    """Deterministic init mimicking nn.Linear default U(-1/sqrt(fan_in), 1/sqrt(fan_in))."""
    kw, kb = jax.random.split(key)
    bound = 1.0 / math.sqrt(fan_in)
    w = jax.random.uniform(kw, shape_w, jnp.float32, -bound, bound)
    b = jax.random.uniform(kb, shape_b, jnp.float32, -bound, bound)
    return w, b


if __name__ == "__main__":
    key = jax.random.PRNGKey(0)

    # ---- Test 1: module-scale shapes (batch=2, seq=8, dim=32, hidden=64);
    #      weights-resident path + megacore row split (2 row tiles).
    k_x, k_l1, k_l2, key = jax.random.split(key, 4)
    batch, seq, dim, hidden = 2, 8, 32, 64
    x = jax.random.normal(k_x, (batch, seq, dim), jnp.float32)
    w1, b1 = _torch_linear_init(k_l1, dim, (dim, hidden), (hidden,))
    w2, b2 = _torch_linear_init(k_l2, hidden, (hidden, dim), (dim,))
    x2d = x.reshape(batch * seq, dim)
    out = feed_forward(x2d, w1, b1, w2, b2).reshape(batch, seq, dim)
    jax.block_until_ready(out)
    ref = _ref_ff(x2d, w1, b1, w2, b2).reshape(batch, seq, dim)
    assert jnp.allclose(out, ref, atol=1e-4, rtol=1e-4), "test1 mismatch"

    # ---- Test 2: hidden-axis reduction (grid=(3,2)); f32 accumulates directly in o_ref.
    k_x, k_l1, k_l2, key = jax.random.split(key, 4)
    M2, dim2, hidden2 = 48, 128, 256
    x2 = jax.random.normal(k_x, (M2, dim2), jnp.float32)
    w1b, b1b = _torch_linear_init(k_l1, dim2, (dim2, hidden2), (hidden2,))
    w2b, b2b = _torch_linear_init(k_l2, hidden2, (hidden2, dim2), (dim2,))
    out2 = feed_forward(x2, w1b, b1b, w2b, b2b, tm=16, th=128)
    jax.block_until_ready(out2)
    ref2 = _ref_ff(x2, w1b, b1b, w2b, b2b)
    assert jnp.allclose(out2, ref2, atol=1e-3, rtol=1e-3), "test2 mismatch"

    # ---- Test 3: ragged M (no wrapper pad of x) + non-128-multiple hidden
    #      (weights zero-padded along hidden), tiled path.
    k_x, k_l1, k_l2, key = jax.random.split(key, 4)
    M3, dim3, hidden3 = 50, 128, 200
    x3 = jax.random.normal(k_x, (M3, dim3), jnp.float32)
    w1c, b1c = _torch_linear_init(k_l1, dim3, (dim3, hidden3), (hidden3,))
    w2c, b2c = _torch_linear_init(k_l2, hidden3, (hidden3, dim3), (dim3,))
    out3 = feed_forward(x3, w1c, b1c, w2c, b2c, tm=16, th=128)
    jax.block_until_ready(out3)
    ref3 = _ref_ff(x3, w1c, b1c, w2c, b2c)
    assert jnp.allclose(out3, ref3, atol=1e-3, rtol=1e-3), "test3 mismatch"

    # ---- Test 4: bf16 tensors -> f32 scratch-accumulator path (tiled).
    k_x, k_l1, k_l2, key = jax.random.split(key, 4)
    M4, dim4, hidden4 = 32, 128, 256
    x4 = jax.random.normal(k_x, (M4, dim4), jnp.float32).astype(jnp.bfloat16)
    w1d, b1d = _torch_linear_init(k_l1, dim4, (dim4, hidden4), (hidden4,))
    w2d, b2d = _torch_linear_init(k_l2, hidden4, (hidden4, dim4), (dim4,))
    w1d, b1d, w2d, b2d = (a.astype(jnp.bfloat16) for a in (w1d, b1d, w2d, b2d))
    out4 = feed_forward(x4, w1d, b1d, w2d, b2d, tm=16, th=128)
    jax.block_until_ready(out4)
    ref4 = _ref_ff(x4, w1d, b1d, w2d, b2d)
    assert jnp.allclose(out4.astype(jnp.float32), ref4, atol=1e-1, rtol=1e-1), "test4 mismatch"

    # ---- Test 5: f32 tensors with bf16 MXU operands (accuracy-relaxed fast path).
    k_x, k_l1, k_l2, key = jax.random.split(key, 4)
    M5, dim5, hidden5 = 64, 128, 256
    x5 = jax.random.normal(k_x, (M5, dim5), jnp.float32)
    w1e, b1e = _torch_linear_init(k_l1, dim5, (dim5, hidden5), (hidden5,))
    w2e, b2e = _torch_linear_init(k_l2, hidden5, (hidden5, dim5), (dim5,))
    out5 = feed_forward(x5, w1e, b1e, w2e, b2e, use_bf16_mxu=True)
    jax.block_until_ready(out5)
    ref5 = _ref_ff(x5, w1e, b1e, w2e, b2e)
    assert jnp.allclose(out5, ref5, atol=5e-2, rtol=5e-2), "test5 mismatch"

    print("KERNEL_OK")
</pallas_src>

<mosaic_0001>
module attributes {stable_mosaic.version = 11 : i64} {
  func.func @kernel(%arg0: i32, %arg1: i32, %arg2: memref<8x32xf32, #tpu.memory_space<vmem>>, %arg3: memref<32x64xf32, #tpu.memory_space<vmem>>, %arg4: memref<1x64xf32, #tpu.memory_space<vmem>>, %arg5: memref<64x32xf32, #tpu.memory_space<vmem>>, %arg6: memref<1x32xf32, #tpu.memory_space<vmem>>, %arg7: memref<8x32xf32, #tpu.memory_space<vmem>>) attributes {dimension_semantics = [#tpu.dimension_semantics<parallel>, #tpu.dimension_semantics<arbitrary>], iteration_bounds = array<i64: 2, 1>, scalar_prefetch = 0 : i64, scratch_operands = 0 : i64, tpu.core_type = #tpu.core_type<tc>, window_params = [{transform_indices = @transform_0, window_bounds = array<i64: 8, 32>}, {transform_indices = @transform_1, window_bounds = array<i64: 32, 64>}, {transform_indices = @transform_2, window_bounds = array<i64: 1, 64>}, {transform_indices = @transform_3, window_bounds = array<i64: 64, 32>}, {pipeline_mode = #tpu.pipeline_mode<synchronous>, transform_indices = @transform_4, window_bounds = array<i64: 1, 32>}, {transform_indices = @transform_5, window_bounds = array<i64: 8, 32>}]} {
    %c0_i32 = arith.constant 0 : i32
    %0 = arith.cmpi eq, %arg1, %c0_i32 : i32
    %1 = arith.extui %0 : i1 to i32
    %c0_i32_0 = arith.constant 0 : i32
    %2 = arith.cmpi ne, %1, %c0_i32_0 : i32
    scf.if %2 {
      %c0_16 = arith.constant 0 : index
      %c0_17 = arith.constant 0 : index
      %22 = vector.load %arg6[%c0_16, %c0_17] : memref<1x32xf32, #tpu.memory_space<vmem>>, vector<1x32xf32>
      %23 = vector.shape_cast %22 : vector<1x32xf32> to vector<1x32xf32>
      %24 = vector.broadcast %23 : vector<1x32xf32> to vector<8x32xf32>
      %c0_18 = arith.constant 0 : index
      %c0_19 = arith.constant 0 : index
      %25 = vector.load %arg7[%c0_18, %c0_19] : memref<8x32xf32, #tpu.memory_space<vmem>>, vector<8x32xf32>
      tpu.vector_store %arg7[%c0_18, %c0_19], %24 {strides = array<i32>} : memref<8x32xf32, #tpu.memory_space<vmem>>, vector<8x32xf32>,
    } else {
    }
    %c0 = arith.constant 0 : index
    %c0_1 = arith.constant 0 : index
    %3 = vector.load %arg2[%c0, %c0_1] : memref<8x32xf32, #tpu.memory_space<vmem>>, vector<8x32xf32>
    %c0_2 = arith.constant 0 : index
    %c0_3 = arith.constant 0 : index
    %4 = vector.load %arg3[%c0_2, %c0_3] : memref<32x64xf32, #tpu.memory_space<vmem>>, vector<32x64xf32>
    %cst = arith.constant dense<0.000000e+00> : vector<8x64xf32>
    %5 = tpu.matmul %3, %4, %cst {dimension_numbers = #tpu.dot_dimension_numbers<[1], [0], [0], [1], [0, 0, 1, 1], [], []>} : vector<8x32xf32>, vector<32x64xf32>, vector<8x64xf32> -> vector<8x64xf32>
    %c0_4 = arith.constant 0 : index
    %c0_5 = arith.constant 0 : index
    %6 = vector.load %arg4[%c0_4, %c0_5] : memref<1x64xf32, #tpu.memory_space<vmem>>, vector<1x64xf32>
    %7 = vector.broadcast %6 : vector<1x64xf32> to vector<8x64xf32>
    %8 = arith.addf %5, %7 : vector<8x64xf32>
    %cst_6 = arith.constant 5.000000e-01 : f32
    %9 = vector.broadcast %cst_6 : f32 to vector<8x64xf32>
    %10 = arith.mulf %9, %8 : vector<8x64xf32>
    %cst_7 = arith.constant 0.707106769 : f32
    %11 = vector.broadcast %cst_7 : f32 to vector<8x64xf32>
    %12 = arith.mulf %8, %11 : vector<8x64xf32>
    %13 = math.erf %12 : vector<8x64xf32>
    %cst_8 = arith.constant 1.000000e+00 : f32
    %14 = vector.broadcast %cst_8 : f32 to vector<8x64xf32>
    %15 = arith.addf %14, %13 : vector<8x64xf32>
    %16 = arith.mulf %10, %15 : vector<8x64xf32>
    %c0_9 = arith.constant 0 : index
    %c0_10 = arith.constant 0 : index
    %17 = vector.load %arg5[%c0_9, %c0_10] : memref<64x32xf32, #tpu.memory_space<vmem>>, vector<64x32xf32>
    %c0_11 = arith.constant 0 : index
    %c0_12 = arith.constant 0 : index
    %18 = vector.load %arg7[%c0_11, %c0_12] : memref<8x32xf32, #tpu.memory_space<vmem>>, vector<8x32xf32>
    %cst_13 = arith.constant dense<0.000000e+00> : vector<8x32xf32>
    %19 = tpu.matmul %16, %17, %cst_13 {dimension_numbers = #tpu.dot_dimension_numbers<[1], [0], [0], [1], [0, 0, 1, 1], [], []>} : vector<8x64xf32>, vector<64x32xf32>, vector<8x32xf32> -> vector<8x32xf32>
    %20 = arith.addf %18, %19 : vector<8x32xf32>
    %c0_14 = arith.constant 0 : index
    %c0_15 = arith.constant 0 : index
    %21 = vector.load %arg7[%c0_14, %c0_15] : memref<8x32xf32, #tpu.memory_space<vmem>>, vector<8x32xf32>
    tpu.vector_store %arg7[%c0_14, %c0_15], %20 {strides = array<i32>} : memref<8x32xf32, #tpu.memory_space<vmem>>, vector<8x32xf32>,
    return
  }
  func.func @transform_0(%arg0: i32, %arg1: i32) -> (i32, i32) {
    %c0_i32 = arith.constant 0 : i32
    %c0_i32_0 = arith.constant 0 : i32
    return %arg0, %c0_i32 : i32, i32
  }
  func.func @transform_1(%arg0: i32, %arg1: i32) -> (i32, i32) {
    %c0_i32 = arith.constant 0 : i32
    %c0_i32_0 = arith.constant 0 : i32
    return %c0_i32, %arg1 : i32, i32
  }
  func.func @transform_2(%arg0: i32, %arg1: i32) -> (i32, i32) {
    %c0_i32 = arith.constant 0 : i32
    %c0_i32_0 = arith.constant 0 : i32
    return %c0_i32, %arg1 : i32, i32
  }
  func.func @transform_3(%arg0: i32, %arg1: i32) -> (i32, i32) {
    %c0_i32 = arith.constant 0 : i32
    %c0_i32_0 = arith.constant 0 : i32
    return %arg1, %c0_i32 : i32, i32
  }
  func.func @transform_4(%arg0: i32, %arg1: i32) -> (i32, i32) {
    %c0_i32 = arith.constant 0 : i32
    %c0_i32_0 = arith.constant 0 : i32
    %c0_i32_1 = arith.constant 0 : i32
    return %c0_i32, %c0_i32_0 : i32, i32
  }
  func.func @transform_5(%arg0: i32, %arg1: i32) -> (i32, i32) {
    %c0_i32 = arith.constant 0 : i32
    %c0_i32_0 = arith.constant 0 : i32
    return %arg0, %c0_i32 : i32, i32
  }
}

</mosaic_0001>

<llo_original>
// kernel: tpu_custom_call.1
$region0: #{tpu_custom_call.1}
  #allocation0 [shape = 'u32[]', space=smem, size = 0x4, offset = 0x4, fixed_abs, tag = 'smem constant byte address 0x4 - core index']
  #allocation1 [shape = 'u32[144,128]{1,0:T(1,128)}', space=vmem, size = 0x12000, scoped, tag = 'internal scratch']
  %s0 = inlined_call_operand.vmem [shape: f32[16,32], index: 0, kind: input, shape index: {}]
  %s1 = inlined_call_operand.vmem [shape: f32[32,64], index: 1, kind: input, shape index: {}]
  %s2 = inlined_call_operand.vmem [shape: f32[1,64], index: 2, kind: input, shape index: {}]
  %s3 = inlined_call_operand.vmem [shape: f32[64,32], index: 3, kind: input, shape index: {}]
  %s4 = inlined_call_operand.vmem [shape: f32[1,32], index: 4, kind: input, shape index: {}]
  %s5 = inlined_call_operand.hbm [shape: f32[16,32], index: 5, kind: output, shape index: {}]
  %s6 = sld [smem:[#allocation0]]
  $region57: #{tpu_custom_call.1} parent=0
    _
  %s8 = ssub.s32 1, %s6
  %s9 = scalar_select 0, %s8, %s6
  $region1: #{tpu_custom_call.1} parent=0
    #allocation2 [shape = 'u8[8192]{0}', space=vmem, size = 0x2000, scoped, tag = 'output window, operand 0']
    #allocation3 [shape = 's32[2]{0}', space=sflag, size = 0x8, scoped, tag = 'scoped memory for tpu_custom_call.1']
    %10 = vsyncpa [#allocation3], 0
    %s11 = scalar_lea.sflag [#allocation3], 1
    %12 = vsyncpa %s11, 0
    loop: start=0, step=1, limit=4
    $region2: #{tpu_custom_call.1} parent=1 // loop_pre_header
      _
    $region3: #{tpu_custom_call.1} parent=1 // loop_header
      %s14 = sphi 0, %s18
      %p15 = scmp.ge.s32.totalorder %s14, 4
      %s21 = sphi 0, %s33
      %s22 = sphi 0, %s29
      %s23 = sphi 0, %s21
      %s24 = sphi 0, %s22
      %s25 = sphi 0, %s23
      %s26 = sphi 0, %s24
      %s36 = sphi 0, %s38
      %s39 = sphi 0, %s36
      %s40 = sphi 0, %s39
      %s56 = sphi 0, %s40
      %s62 = sphi 0, %s64
      %s65 = sphi 0, %s62
      %s66 = sphi 0, %s65
      %s82 = sphi 0, %s66
      %s88 = sphi 0, %s90
      %s91 = sphi 0, %s88
      %s92 = sphi 0, %s91
      %s108 = sphi 0, %s92
      %s114 = sphi 0, %s116
      %s117 = sphi 0, %s114
      %s118 = sphi 0, %s117
      %s134 = sphi 0, %s118
      %s138 = sphi 0, %s138
      %s140 = sphi 0, %s138
      %s141 = sphi 0, %s140
      %s155 = sphi 0, %s141
      %s161 = sphi 0, %s163
      %s164 = sphi 0, %s161
      %s165 = sphi 0, %s164
      %s181 = sphi 0, %s165
    $region4: #{tpu_custom_call.1} parent=1 // loop_header_branch
      %17 = sbr.rel (%p15) target = $region8
    $region5: #{tpu_custom_call.1} parent=1 // loop_body
      %s19 = ssub.s32 %s14, 1
      %s20 = ssub.s32 %s14, 2
      %s27 = sadd.s32 1, %s22
      %p28 = scmp.ge.s32.totalorder %s27, 1
      %s29 = scalar_select %p28, 0, %s27
      %s30 = sadd.s32 1, %s21
      %s31 = scalar_select %p28, %s30, %s21
      %p32 = scmp.ge.s32.totalorder %s31, 2
      %s33 = scalar_select %p32, 0, %s31
      %s34 = ssub.s32 %s21, %s33
      %p35 = scmp.eq.s32.totalorder %s34, 0
      %s37 = sadd.s32 %s36, 1
      %s38 = scalar_select %p35, %s36, %s37
      %p41 = pneg %p35
      %p42 = scmp.eq.s32.totalorder %s14, 1
      %p43 = por %p41, %p42
      %p44 = scmp.ne.s32.totalorder %s36, %s39
      %p45 = scmp.eq.s32.totalorder %s14, 0
      %p46 = por %p44, %p45
      %p47 = scmp.ne.s32.totalorder %s36, %s39
      %p48 = scmp.eq.s32.totalorder %s19, 1
      %p49 = por %p47, %p48
      %p50 = scmp.ne.s32.totalorder %s39, %s40
      %p51 = scmp.eq.s32.totalorder %s19, 0
      %p52 = por %p50, %p51
      %p53 = scmp.ne.s32.totalorder %s39, %s40
      %p54 = scmp.eq.s32.totalorder %s20, 1
      %p55 = por %p53, %p54
      %p57 = scmp.ne.s32.totalorder %s40, %s56
      %p58 = scmp.eq.s32.totalorder %s20, 0
      %p59 = por %p57, %p58
      %s60 = ssub.s32 %s22, %s29
      %p61 = scmp.eq.s32.totalorder %s60, 0
      %s63 = sadd.s32 %s62, 1
      %s64 = scalar_select %p61, %s62, %s63
      %p67 = pneg %p61
      %p68 = scmp.eq.s32.totalorder %s14, 1
      %p69 = por %p67, %p68
      %p70 = scmp.ne.s32.totalorder %s62, %s65
      %p71 = scmp.eq.s32.totalorder %s14, 0
      %p72 = por %p70, %p71
      %p73 = scmp.ne.s32.totalorder %s62, %s65
      %p74 = scmp.eq.s32.totalorder %s19, 1
      %p75 = por %p73, %p74
      %p76 = scmp.ne.s32.totalorder %s65, %s66
      %p77 = scmp.eq.s32.totalorder %s19, 0
      %p78 = por %p76, %p77
      %p79 = scmp.ne.s32.totalorder %s65, %s66
      %p80 = scmp.eq.s32.totalorder %s20, 1
      %p81 = por %p79, %p80
      %p83 = scmp.ne.s32.totalorder %s66, %s82
      %p84 = scmp.eq.s32.totalorder %s20, 0
      %p85 = por %p83, %p84
      %s86 = ssub.s32 %s22, %s29
      %p87 = scmp.eq.s32.totalorder %s86, 0
      %s89 = sadd.s32 %s88, 1
      %s90 = scalar_select %p87, %s88, %s89
      %p93 = pneg %p87
      %p94 = scmp.eq.s32.totalorder %s14, 1
      %p95 = por %p93, %p94
      %p96 = scmp.ne.s32.totalorder %s88, %s91
      %p97 = scmp.eq.s32.totalorder %s14, 0
      %p98 = por %p96, %p97
      %p99 = scmp.ne.s32.totalorder %s88, %s91
      %p100 = scmp.eq.s32.totalorder %s19, 1
      %p101 = por %p99, %p100
      %p102 = scmp.ne.s32.totalorder %s91, %s92
      %p103 = scmp.eq.s32.totalorder %s19, 0
      %p104 = por %p102, %p103
      %p105 = scmp.ne.s32.totalorder %s91, %s92
      %p106 = scmp.eq.s32.totalorder %s20, 1
      %p107 = por %p105, %p106
      %p109 = scmp.ne.s32.totalorder %s92, %s108
      %p110 = scmp.eq.s32.totalorder %s20, 0
      %p111 = por %p109, %p110
      %s112 = ssub.s32 %s22, %s29
      %p113 = scmp.eq.s32.totalorder %s112, 0
      %s115 = sadd.s32 %s114, 1
      %s116 = scalar_select %p113, %s114, %s115
      %p119 = pneg %p113
      %p120 = scmp.eq.s32.totalorder %s14, 1
      %p121 = por %p119, %p120
      %p122 = scmp.ne.s32.totalorder %s114, %s117
      %p123 = scmp.eq.s32.totalorder %s14, 0
      %p124 = por %p122, %p123
      %p125 = scmp.ne.s32.totalorder %s114, %s117
      %p126 = scmp.eq.s32.totalorder %s19, 1
      %p127 = por %p125, %p126
      %p128 = scmp.ne.s32.totalorder %s117, %s118
      %p129 = scmp.eq.s32.totalorder %s19, 0
      %p130 = por %p128, %p129
      %p131 = scmp.ne.s32.totalorder %s117, %s118
      %p132 = scmp.eq.s32.totalorder %s20, 1
      %p133 = por %p131, %p132
      %p135 = scmp.ne.s32.totalorder %s118, %s134
      %p136 = scmp.eq.s32.totalorder %s20, 0
      %p137 = por %p135, %p136
      %s139 = sadd.s32 %s138, 1
      %p142 = scmp.eq.s32.totalorder %s14, 1
      %p143 = scmp.ne.s32.totalorder %s138, %s140
      %p144 = scmp.eq.s32.totalorder %s14, 0
      %p145 = por %p143, %p144
      %p146 = scmp.ne.s32.totalorder %s138, %s140
      %p147 = scmp.eq.s32.totalorder %s19, 1
      %p148 = por %p146, %p147
      %p149 = scmp.ne.s32.totalorder %s140, %s141
      %p150 = scmp.eq.s32.totalorder %s19, 0
      %p151 = por %p149, %p150
      %p152 = scmp.ne.s32.totalorder %s140, %s141
      %p153 = scmp.eq.s32.totalorder %s20, 1
      %p154 = por %p152, %p153
      %p156 = scmp.ne.s32.totalorder %s141, %s155
      %p157 = scmp.eq.s32.totalorder %s20, 0
      %p158 = por %p156, %p157
      %s159 = ssub.s32 %s21, %s33
      %p160 = scmp.eq.s32.totalorder %s159, 0
      %s162 = sadd.s32 %s161, 1
      %s163 = scalar_select %p160, %s161, %s162
      %p166 = pneg %p160
      %p167 = scmp.eq.s32.totalorder %s14, 1
      %p168 = por %p166, %p167
      %p169 = scmp.ne.s32.totalorder %s161, %s164
      %p170 = scmp.eq.s32.totalorder %s14, 0
      %p171 = por %p169, %p170
      %p172 = scmp.ne.s32.totalorder %s161, %s164
      %p173 = scmp.eq.s32.totalorder %s19, 1
      %p174 = por %p172, %p173
      %p175 = scmp.ne.s32.totalorder %s164, %s165
      %p176 = scmp.eq.s32.totalorder %s19, 0
      %p177 = por %p175, %p176
      %p178 = scmp.ne.s32.totalorder %s164, %s165
      %p179 = scmp.eq.s32.totalorder %s20, 1
      %p180 = por %p178, %p179
      %p182 = scmp.ne.s32.totalorder %s165, %s181
      %p183 = scmp.eq.s32.totalorder %s20, 0
      %p184 = por %p182, %p183
      %p185 = scmp.le.s32.totalorder 1, %s14
      %p186 = scmp.lt.s32.totalorder %s14, 3
      %p187 = pnand %p185, %p186
      %p188 = pneg %p187
      // Predicated region
      $region9: #{tpu_custom_call.1} parent=5 // pred_check
        _
      $region10: #{tpu_custom_call.1} parent=5 // pred_check_branch
        %190 = sbr.rel (%p187) target = $region12
      $region11: #{tpu_custom_call.1} parent=5 // pred_region
        %s191 = ssub.s32 %s14, 1
        // Predicated region
        $region13: #{tpu_custom_call.1} parent=11 // pred_check
          %p192 = pneg %p78
        $region14: #{tpu_custom_call.1} parent=11 // pred_check_branch
          %194 = sbr.rel (%p192) target = $region16
        $region15: #{tpu_custom_call.1} parent=11 // pred_region
          %p195 = scmp.lt.s32.totalorder %s24, 0
          %s196 = scalar_select %p195, %s24, 0
          %s197 = smul.addr %s196, 8
          %s198 = scalar_lea.vmem %s1, %s197
        $region16: #{tpu_custom_call.1} parent=11 // pred_fallthru
          _
        // Predicated region
        $region17: #{tpu_custom_call.1} parent=11 // pred_check
          %p199 = pneg %p104
        $region18: #{tpu_custom_call.1} parent=11 // pred_check_branch
          %201 = sbr.rel (%p199) target = $region20
        $region19: #{tpu_custom_call.1} parent=11 // pred_region
          %p202 = scmp.lt.s32.totalorder %s24, 0
          %s203 = scalar_select %p202, %s24, 0
          %s204 = scalar_lea.vmem %s2, %s203
        $region20: #{tpu_custom_call.1} parent=11 // pred_fallthru
          _
        // Predicated region
        $region21: #{tpu_custom_call.1} parent=11 // pred_check
          %p205 = pneg %p130
        $region22: #{tpu_custom_call.1} parent=11 // pred_check_branch
          %207 = sbr.rel (%p205) target = $region24
        $region23: #{tpu_custom_call.1} parent=11 // pred_region
          %s208 = smul.u32 8, %s24
          %p209 = scmp.lt.s32.totalorder %s208, 7
          %s210 = scalar_select %p209, %s208, 7
          %s211 = smul.addr %s210, 8
          %s212 = scalar_lea.vmem %s3, %s211
          %s213 = smul.u32 8, %s24
        $region24: #{tpu_custom_call.1} parent=11 // pred_fallthru
          _
        // Predicated region
        $region25: #{tpu_custom_call.1} parent=11 // pred_check
          %p214 = pneg %p151
        $region26: #{tpu_custom_call.1} parent=11 // pred_check_branch
          %216 = sbr.rel (%p214) target = $region28
        $region27: #{tpu_custom_call.1} parent=11 // pred_region
          _
        $region28: #{tpu_custom_call.1} parent=11 // pred_fallthru
          _
      $region12: #{tpu_custom_call.1} parent=5 // pred_fallthru
        _
      %p217 = scmp.lt.s32.totalorder %s14, 2
      // Predicated region
      $region29: #{tpu_custom_call.1} parent=5 // pred_check
        %p218 = pneg %p217
      $region30: #{tpu_custom_call.1} parent=5 // pred_check_branch
        %220 = sbr.rel (%p218) target = $region32
      $region31: #{tpu_custom_call.1} parent=5 // pred_region
        // Predicated region
        $region33: #{tpu_custom_call.1} parent=31 // pred_check
          %p221 = pneg %p46
        $region34: #{tpu_custom_call.1} parent=31 // pred_check_branch
          %223 = sbr.rel (%p221) target = $region36
        $region35: #{tpu_custom_call.1} parent=31 // pred_region
          %p224 = scmp.lt.s32.totalorder %s21, 1
          %s225 = scalar_select %p224, %s21, 1
          %s226 = smul.addr %s225, 8
          %s227 = scalar_lea.vmem %s0, %s226
        $region36: #{tpu_custom_call.1} parent=31 // pred_fallthru
          _
      $region32: #{tpu_custom_call.1} parent=5 // pred_fallthru
        _
      %p228 = scmp.le.s32.totalorder 1, %s14
      %p229 = scmp.lt.s32.totalorder %s14, 3
      %p230 = pnand %p228, %p229
      %p231 = pneg %p230
      // Predicated region
      $region37: #{tpu_custom_call.1} parent=5 // pred_check
        _
      $region38: #{tpu_custom_call.1} parent=5 // pred_check_branch
        %233 = sbr.rel (%p230) target = $region40
      $region39: #{tpu_custom_call.1} parent=5 // pred_region
        %s234 = ssub.s32 %s14, 1
        %p235 = scmp.lt.s32.totalorder %s23, 1
        %s236 = scalar_select %p235, %s23, 1
        %s237 = smul.addr %s236, 8
        %s238 = scalar_lea.vmem %s0, %s237
        %p239 = pneg %p52
        %p240 = pneg %p49
        %p241 = scmp.lt.s32.totalorder %s24, 0
        %s242 = scalar_select %p241, %s24, 0
        %s243 = smul.addr %s242, 8
        %s244 = scalar_lea.vmem %s1, %s243
        %p245 = pneg %p78
        %p246 = pneg %p75
        %p247 = scmp.lt.s32.totalorder %s24, 0
        %s248 = scalar_select %p247, %s24, 0
        %s249 = scalar_lea.vmem %s2, %s248
        %p250 = pneg %p104
        %p251 = pneg %p101
        %s252 = smul.u32 8, %s24
        %p253 = scmp.lt.s32.totalorder %s252, 7
        %s254 = scalar_select %p253, %s252, 7
        %s255 = smul.addr %s254, 8
        %s256 = scalar_lea.vmem %s3, %s255
        %p257 = pneg %p130
        %p258 = pneg %p127
        %p259 = pneg %p151
        %p260 = pneg %p148
        %p261 = pneg %p177
        %p262 = pneg %p174
        %s263 = sand.u32 %s164, 1
        %s264 = scalar_lea.sflag [#allocation3], %s263
        %s265 = sand.u32 %s164, 1
        %s266 = smul.addr %s265, 8
        %s267 = scalar_lea.vmem [#allocation2], %s266
        %p268 = scmp.lt.s32.totalorder %s23, 1
        %s269 = scalar_select %p268, %s23, 1
        %s270 = smul.addr %s269, 8
        %s271 = scalar_lea.vmem %s0, %s270
        %p272 = scmp.lt.s32.totalorder %s24, 0
        %s273 = scalar_select %p272, %s24, 0
        %s274 = smul.addr %s273, 8
        %s275 = scalar_lea.vmem %s1, %s274
        %p276 = scmp.lt.s32.totalorder %s24, 0
        %s277 = scalar_select %p276, %s24, 0
        %s278 = scalar_lea.vmem %s2, %s277
        %s279 = smul.u32 8, %s24
        %p280 = scmp.lt.s32.totalorder %s279, 7
        %s281 = scalar_select %p280, %s279, 7
        %s282 = smul.addr %s281, 8
        %s283 = scalar_lea.vmem %s3, %s282
        %s284 = smul.u32 8, %s24
        %p285 = scmp.eq.s32.totalorder %s24, 0
        // Predicated region
        $region41: #{tpu_custom_call.1} parent=39 // pred_check
          %p286 = pneg %p285
        $region42: #{tpu_custom_call.1} parent=39 // pred_check_branch
          %288 = sbr.rel (%p286) target = $region44
        $region43: #{tpu_custom_call.1} parent=39 // pred_region
          %v289 = vld [vmem:[%s4] sm:$0x1]
          %v291 = vlaneseq
          %v292 = vshrl.u32 %v291, 7
          %v293 = vsub.s32 0, %v292
          %v294 = vrot.slane %v289, %v293
          %vm296 = vcmask 261120
          %297 = vst.msk [vmem:[%s267] sm:$0xff] %vm296, %v294
        $region44: #{tpu_custom_call.1} parent=39 // pred_fallthru
          _
        %v298 = vld [vmem:[%s271] sm:$0xff]
        %v299 = vld [vmem:[%s275] sm:$0xff]
        %v300 = vld [vmem:[%s275 + $0x8] sm:$0xff]
        %v301 = vld [vmem:[%s275 + $0x10] sm:$0xff]
        %v302 = vld [vmem:[%s275 + $0x18] sm:$0xff]
        %v303 = vld [vmem:[%s278] sm:$0x1]
        %v305 = vlaneseq
        %v306 = vshrl.u32 %v305, 7
        %v307 = vsub.s32 0, %v306
        %v308 = vrot.slane %v303, %v307
        %vm310 = vcmask 261120
        %v312 = vsel %vm310, %v298, 0
        %314 = vmatprep.subr.mxu0 0.0
        %315 = vmatpush1.msra.mxu0 %v299
        %316 = vmatprep.subr.mxu0 0.0
        %317 = vmatpush1.msra.mxu0 %v300
        %318 = vmatprep.subr.mxu0 0.0
        %319 = vmatpush1.msra.mxu0 %v301
        %320 = vmatprep.subr.mxu0 0.0
        %321 = vmatpush1.msra.mxu0 %v302
        %322 = vmatprep.subr.mxu0 0.0
        %323 = vmatpush1.msra.mxu0 0.0
        %324 = vmatprep.subr.mxu0 0.0
        %325 = vmatpush1.msra.mxu0 0.0
        %326 = vmatprep.subr.mxu0 0.0
        %327 = vmatpush1.msra.mxu0 0.0
        %328 = vmatprep.subr.mxu0 0.0
        %329 = vmatpush1.msra.mxu0 0.0
        %330 = vmatprep.subr.mxu0 0.0
        %331 = vmatpush1.msra.mxu0 0.0
        %332 = vmatprep.subr.mxu0 0.0
        %333 = vmatpush1.msra.mxu0 0.0
        %334 = vmatprep.subr.mxu0 0.0
        %335 = vmatpush1.msra.mxu0 0.0
        %336 = vmatprep.subr.mxu0 0.0
        %337 = vmatpush1.msra.mxu0 0.0
        %338 = vmatprep.subr.mxu0 0.0
        %339 = vmatpush1.msra.mxu0 0.0
        %340 = vmatprep.subr.mxu0 0.0
        %341 = vmatpush1.msra.mxu0 0.0
        %342 = vmatprep.subr.mxu0 0.0
        %343 = vmatpush1.msra.mxu0 0.0
        %344 = vmatprep.subr.mxu0 0.0
        %345 = vmatpush1.msra.mxu0 0.0
        %346 = vmatprep.subr.mxu0 0.0
        %347 = vmatpush1.msra.mxu0 0.0
        %348 = vmatprep.subr.mxu0 0.0
        %349 = vmatpush1.msra.mxu0 0.0
        %350 = vmatprep.subr.mxu0 0.0
        %351 = vmatpush1.msra.mxu0 0.0
        %352 = vmatprep.subr.mxu0 0.0
        %353 = vmatpush1.msra.mxu0 0.0
        %354 = vmatprep.subr.mxu0 0.0
        %355 = vmatpush1.msra.mxu0 0.0
        %356 = vmatprep.subr.mxu0 0.0
        %357 = vmatpush1.msra.mxu0 0.0
        %358 = vmatprep.subr.mxu0 0.0
        %359 = vmatpush1.msra.mxu0 0.0
        %360 = vmatprep.subr.mxu0 0.0
        %361 = vmatpush1.msra.mxu0 0.0
        %362 = vmatprep.subr.mxu0 0.0
        %363 = vmatpush1.msra.mxu0 0.0
        %364 = vmatprep.subr.mxu0 0.0
        %365 = vmatpush1.msra.mxu0 0.0
        %366 = vmatprep.subr.mxu0 0.0
        %367 = vmatpush1.msra.mxu0 0.0
        %368 = vmatprep.subr.mxu0 0.0
        %369 = vmatpush1.msra.mxu0 0.0
        %370 = vmatprep.subr.mxu0 0.0
        %371 = vmatpush1.msra.mxu0 0.0
        %372 = vmatprep.subr.mxu0 0.0
        %373 = vmatpush1.msra.mxu0 0.0
        %374 = vmatprep.subr.mxu0 0.0
        %375 = vmatpush1.msra.mxu0 0.0
        %376 = vmatprep.subr.mxu0 0.0
        %377 = vmatpush1.msra.mxu0 0.0
        %378 = vmatprep.mubr.f32.mxu0 0.0
        %379 = vmatmul.mubr.f32.gmra.mrb[0].mxu0 %v312
        %v380 = vpop.f32.mrb[0].mxu0
        %v381 = vadd.f32 %v308, %v380
        %v382 = vpop.f32.mrb[0].mxu0
        %383 = vdwg.mxu0
        %v384 = vmul.f32 %v381, 0.5
        %v385 = vmul.f32 %v381, 0.70710677
        %v386 = verf.f32.pop %v385
        %v387 = vadd.f32 %v386, 1.0
        %v388 = vmul.f32 %v384, %v387
        %v389 = vld [vmem:[%s283] sm:$0xff]
        %v390 = vld [vmem:[%s283 + $0x8] sm:$0xff]
        %v391 = vld [vmem:[%s283 + $0x10] sm:$0xff]
        %v392 = vld [vmem:[%s283 + $0x18] sm:$0xff]
        %v393 = vld [vmem:[%s283 + $0x20] sm:$0xff]
        %v394 = vld [vmem:[%s283 + $0x28] sm:$0xff]
        %v395 = vld [vmem:[%s283 + $0x30] sm:$0xff]
        %v396 = vld [vmem:[%s283 + $0x38] sm:$0xff]
        %v397 = vld [vmem:[%s267] sm:$0xff]
        %vm398 = vcmask 523264
        %v400 = vsel %vm398, %v388, 0
        %402 = vmatprep.subr.mxu0 0.0
        %403 = vmatpush1.msra.mxu0 %v389
        %404 = vmatprep.subr.mxu0 0.0
        %405 = vmatpush1.msra.mxu0 %v390
        %406 = vmatprep.subr.mxu0 0.0
        %407 = vmatpush1.msra.mxu0 %v391
        %408 = vmatprep.subr.mxu0 0.0
        %409 = vmatpush1.msra.mxu0 %v392
        %410 = vmatprep.subr.mxu0 0.0
        %411 = vmatpush1.msra.mxu0 %v393
        %412 = vmatprep.subr.mxu0 0.0
        %413 = vmatpush1.msra.mxu0 %v394
        %414 = vmatprep.subr.mxu0 0.0
        %415 = vmatpush1.msra.mxu0 %v395
        %416 = vmatprep.subr.mxu0 0.0
        %417 = vmatpush1.msra.mxu0 %v396
        %418 = vmatprep.subr.mxu0 0.0
        %419 = vmatpush1.msra.mxu0 0.0
        %420 = vmatprep.subr.mxu0 0.0
        %421 = vmatpush1.msra.mxu0 0.0
        %422 = vmatprep.subr.mxu0 0.0
        %423 = vmatpush1.msra.mxu0 0.0
        %424 = vmatprep.subr.mxu0 0.0
        %425 = vmatpush1.msra.mxu0 0.0
        %426 = vmatprep.subr.mxu0 0.0
        %427 = vmatpush1.msra.mxu0 0.0
        %428 = vmatprep.subr.mxu0 0.0
        %429 = vmatpush1.msra.mxu0 0.0
        %430 = vmatprep.subr.mxu0 0.0
        %431 = vmatpush1.msra.mxu0 0.0
        %432 = vmatprep.subr.mxu0 0.0
        %433 = vmatpush1.msra.mxu0 0.0
        %434 = vmatprep.subr.mxu0 0.0
        %435 = vmatpush1.msra.mxu0 0.0
        %436 = vmatprep.subr.mxu0 0.0
        %437 = vmatpush1.msra.mxu0 0.0
        %438 = vmatprep.subr.mxu0 0.0
        %439 = vmatpush1.msra.mxu0 0.0
        %440 = vmatprep.subr.mxu0 0.0
        %441 = vmatpush1.msra.mxu0 0.0
        %442 = vmatprep.subr.mxu0 0.0
        %443 = vmatpush1.msra.mxu0 0.0
        %444 = vmatprep.subr.mxu0 0.0
        %445 = vmatpush1.msra.mxu0 0.0
        %446 = vmatprep.subr.mxu0 0.0
        %447 = vmatpush1.msra.mxu0 0.0
        %448 = vmatprep.subr.mxu0 0.0
        %449 = vmatpush1.msra.mxu0 0.0
        %450 = vmatprep.subr.mxu0 0.0
        %451 = vmatpush1.msra.mxu0 0.0
        %452 = vmatprep.subr.mxu0 0.0
        %453 = vmatpush1.msra.mxu0 0.0
        %454 = vmatprep.subr.mxu0 0.0
        %455 = vmatpush1.msra.mxu0 0.0
        %456 = vmatprep.subr.mxu0 0.0
        %457 = vmatpush1.msra.mxu0 0.0
        %458 = vmatprep.subr.mxu0 0.0
        %459 = vmatpush1.msra.mxu0 0.0
        %460 = vmatprep.subr.mxu0 0.0
        %461 = vmatpush1.msra.mxu0 0.0
        %462 = vmatprep.subr.mxu0 0.0
        %463 = vmatpush1.msra.mxu0 0.0
        %464 = vmatprep.subr.mxu0 0.0
        %465 = vmatpush1.msra.mxu0 0.0
        %466 = vmatprep.mubr.f32.mxu0 0.0
        %467 = vmatmul.mubr.f32.gmra.mrb[0].mxu0 %v400
        %v468 = vpop.f32.mrb[0].mxu0
        %v469 = vadd.f32 0.0, %v468
        %v470 = vpop.f32.mrb[0].mxu0
        %471 = vdwg.mxu0
        %v472 = vadd.f32 %v397, %v469
        %473 = vst.msk [vmem:[%s267] sm:$0xff] %vm310, %v472
        %s474 = sand.u32 %s164, 1
        %s475 = scalar_lea.sflag [#allocation3], %s474
        %s476 = sand.u32 %s164, 1
        %s477 = smul.addr %s476, 8
        %s478 = scalar_lea.vmem [#allocation2], %s477
        // Predicated region
        $region45: #{tpu_custom_call.1} parent=39 // pred_check
          %p479 = pneg %p174
        $region46: #{tpu_custom_call.1} parent=39 // pred_check_branch
          %481 = sbr.rel (%p479) target = $region48
        $region47: #{tpu_custom_call.1} parent=39 // pred_region
          %s483 = ssub.s32 128, 128
          %484 = vsyncadd %s475, %s483
          %s485 = smul.addr %s23, 128
          %s486 = scalar_lea.hbm %s5, %s485
          %s488 = sshll.u32 %s478, 4
          %s489 = int_to_ptr.vmem [resolvable:$true] %s488
          %491 = dma.vmem_to_hbm [thread:$0]  %s489, 128, %s486, %s475
        $region48: #{tpu_custom_call.1} parent=39 // pred_fallthru
          _
      $region40: #{tpu_custom_call.1} parent=5 // pred_fallthru
        _
      %p492 = scmp.le.s32.totalorder 2, %s14
      // Predicated region
      $region49: #{tpu_custom_call.1} parent=5 // pred_check
        %p493 = pneg %p492
      $region50: #{tpu_custom_call.1} parent=5 // pred_check_branch
        %495 = sbr.rel (%p493) target = $region52
      $region51: #{tpu_custom_call.1} parent=5 // pred_region
        %s496 = ssub.s32 %s14, 2
        // Predicated region
        $region53: #{tpu_custom_call.1} parent=51 // pred_check
          %p497 = pneg %p180
        $region54: #{tpu_custom_call.1} parent=51 // pred_check_branch
          %499 = sbr.rel (%p497) target = $region56
        $region55: #{tpu_custom_call.1} parent=51 // pred_region
          %s500 = sand.u32 %s165, 1
          %s501 = scalar_lea.sflag [#allocation3], %s500
          %s502 = sand.u32 %s165, 1
          %s503 = smul.addr %s502, 8
          %s504 = scalar_lea.vmem [#allocation2], %s503
          %505 = dma.done %s501, 128
        $region56: #{tpu_custom_call.1} parent=51 // pred_fallthru
          _
      $region52: #{tpu_custom_call.1} parent=5 // pred_fallthru
        _
    $region6: #{tpu_custom_call.1} parent=1 // loop_footer
      %s18 = sadd.s32 1, %s14
    $region7: #{tpu_custom_call.1} parent=1 // loop_footer_branch
      %13 = sbr.rel target = $region3
    $region8: #{tpu_custom_call.1} parent=1 // loop_exit
      _
    %506 = vsyncpa [#allocation3], 1
    %s507 = scalar_lea.sflag [#allocation3], 1
    %508 = vsyncpa %s507, 1

</llo_original>
